<compile_context>
chip_gen: v5e
topology: v5e:2x2
jax: 0.10.0
libtpu: 0.0.40
codegen_flags: <defaults>
</compile_context>

<pallas_src>
import functools

import jax
import jax.numpy as jnp
from jax.experimental import pallas as pl
from jax.experimental.pallas import tpu as pltpu


def _round_up(v, m):
    return (v + m - 1) // m * m


def _gcn_kernel(a_ref, x_ref, w_ref, b_ref, o_ref, acc_ref, *,
                agg_first, apply_relu):
    # a_ref:  [TM, TK]        bf16 row/col tile of A_norm
    # x_ref:  [TK, Fin]       bf16 node-feature tile (source rows)
    # w_ref:  [Fin, Fout_pad] bf16 weight (pre-transposed, lane-padded)
    # b_ref:  [1,  Fout_pad]  f32 bias (lane-padded)
    # o_ref:  [TM, Fout_pad]  f32 output (lane-dense)
    # acc_ref:[TM, Fin] or [TM, Fout_pad] f32 accumulator over the K axis
    k = pl.program_id(1)

    @pl.when(k == 0)
    def _():
        acc_ref[...] = jnp.zeros_like(acc_ref)

    a = a_ref[...]
    x = x_ref[...]
    if agg_first:
        # carry only Fin columns through the big A matmul
        acc_ref[...] += jnp.dot(a, x, preferred_element_type=jnp.float32)
    else:
        xw = jnp.dot(x, w_ref[...],
                     preferred_element_type=jnp.float32).astype(jnp.bfloat16)
        acc_ref[...] += jnp.dot(a, xw, preferred_element_type=jnp.float32)

    @pl.when(k == pl.num_programs(1) - 1)
    def _():
        if agg_first:
            out = jnp.dot(acc_ref[...].astype(jnp.bfloat16), w_ref[...],
                          preferred_element_type=jnp.float32) + b_ref[...]
        else:
            out = acc_ref[...] + b_ref[...]
        if apply_relu:
            out = jnp.maximum(out, 0.0)
        o_ref[...] = out.astype(o_ref.dtype)


def gcn_conv_relu(a_norm, x, w, b, *, apply_relu=True):
    """Fused GCNConv (+ optional ReLU) in a single Pallas call."""
    n = x.shape[0]
    f_in = x.shape[1]
    f_out = w.shape[1]

    f_out_pad = _round_up(f_out, 128)           # lane-dense output slab
    tm = min(256, _round_up(n, 8))              # row tile  (parallel axis)
    tk = min(512, _round_up(n, 128))            # reduction tile (arbitrary)
    n_rows = _round_up(n, tm)
    n_cols = _round_up(n, tk)

    # Pad + cast MXU operands to bf16 (accumulation stays f32 in-kernel).
    a_p = jnp.zeros((n_rows, n_cols), jnp.bfloat16)
    a_p = a_p.at[:n, :n].set(a_norm.astype(jnp.bfloat16))
    x_p = jnp.zeros((n_cols, f_in), jnp.bfloat16)
    x_p = x_p.at[:n, :].set(x.astype(jnp.bfloat16))
    w_p = jnp.zeros((f_in, f_out_pad), jnp.bfloat16)
    w_p = w_p.at[:, :f_out].set(w.astype(jnp.bfloat16))
    b_p = jnp.zeros((1, f_out_pad), jnp.float32)
    b_p = b_p.at[0, :f_out].set(b.astype(jnp.float32))

    # Route the narrower feature width through the dominant A matmul.
    agg_first = f_in <= f_out_pad
    acc_cols = f_in if agg_first else f_out_pad

    kernel = functools.partial(_gcn_kernel, agg_first=agg_first,
                               apply_relu=apply_relu)
    out = pl.pallas_call(
        kernel,
        out_shape=jax.ShapeDtypeStruct((n_rows, f_out_pad), jnp.float32),
        grid=(n_rows // tm, n_cols // tk),
        in_specs=[
            pl.BlockSpec((tm, tk), lambda i, k: (i, k)),
            pl.BlockSpec((tk, f_in), lambda i, k: (k, 0)),
            pl.BlockSpec((f_in, f_out_pad), lambda i, k: (0, 0)),
            pl.BlockSpec((1, f_out_pad), lambda i, k: (0, 0)),
        ],
        out_specs=pl.BlockSpec((tm, f_out_pad), lambda i, k: (i, 0)),
        scratch_shapes=[pltpu.VMEM((tm, acc_cols), jnp.float32)],
        compiler_params=pltpu.CompilerParams(
            dimension_semantics=("parallel", "arbitrary"),
        ),
    )(a_p, x_p, w_p, b_p)
    return out[:n, :f_out]


def build_gcn_adjacency(edge_index, num_nodes):
    """Dense D^{-1/2}(A+I)D^{-1/2}; A[i, j] = #edges j->i (PyG gcn_norm)."""
    src = edge_index[0]
    dst = edge_index[1]
    counts = jnp.zeros((num_nodes, num_nodes), jnp.float32)
    counts = counts.at[dst, src].add(1.0)
    counts = counts + jnp.eye(num_nodes, dtype=jnp.float32)   # self-loops
    deg = counts.sum(axis=1)                                  # in-degree
    d_inv_sqrt = jnp.where(deg > 0, 1.0 / jnp.sqrt(deg), 0.0)
    return d_inv_sqrt[:, None] * counts * d_inv_sqrt[None, :]


def gcn_rel_forward(x, edge_index, params):
    n = x.shape[0]
    a_norm = build_gcn_adjacency(edge_index, n)
    out = gcn_conv_relu(a_norm, x, params["w"], params["b"], apply_relu=True)
    # F.dropout: identity (inference semantics)
    return out


def init_params(key, input_dim, output_dim):
    kw, kb = jax.random.split(key, 2)
    scale = 1.0 / jnp.sqrt(input_dim)
    # weight stored pre-transposed as [in, out] (PyTorch Linear is [out, in]).
    return {
        "w": jax.random.uniform(kw, (input_dim, output_dim), jnp.float32,
                                -scale, scale),
        "b": jax.random.uniform(kb, (output_dim,), jnp.float32,
                                -scale, scale),
    }


if __name__ == "__main__":
    N = 64            # nodes
    E = 256           # edges
    INPUT_DIM = 16
    OUTPUT_DIM = 32

    key = jax.random.PRNGKey(0)
    kx, ke, kp = jax.random.split(key, 3)

    x = jax.random.normal(kx, (N, INPUT_DIM), jnp.float32)
    edge_index = jax.random.randint(ke, (2, E), 0, N, dtype=jnp.int32)
    params = init_params(kp, INPUT_DIM, OUTPUT_DIM)

    out = jax.jit(gcn_rel_forward)(x, edge_index, params)
    jax.block_until_ready(out)

    # pure-JAX reference check of the fused kernel math (bf16 MXU inputs ->
    # loosened tolerance; accumulation is f32)
    a = build_gcn_adjacency(edge_index, N)
    ref = jnp.maximum(a @ (x @ params["w"]) + params["b"], 0.0)
    assert out.shape == (N, OUTPUT_DIM)
    assert jnp.allclose(out, ref, atol=3e-2, rtol=3e-2)

    print("KERNEL_OK")
</pallas_src>

<mosaic_0001>
module attributes {stable_mosaic.version = 11 : i64} {
  func.func @_gcn_kernel(%arg0: i32, %arg1: i32, %arg2: memref<64x128xbf16, #tpu.memory_space<vmem>>, %arg3: memref<128x16xbf16, #tpu.memory_space<vmem>>, %arg4: memref<16x128xbf16, #tpu.memory_space<vmem>>, %arg5: memref<1x128xf32, #tpu.memory_space<vmem>>, %arg6: memref<64x128xf32, #tpu.memory_space<vmem>>, %arg7: memref<64x16xf32, #tpu.memory_space<vmem>>) attributes {dimension_semantics = [#tpu.dimension_semantics<parallel>, #tpu.dimension_semantics<arbitrary>], iteration_bounds = array<i64: 1, 1>, scalar_prefetch = 0 : i64, scratch_operands = 1 : i64, tpu.core_type = #tpu.core_type<tc>, window_params = [{transform_indices = @transform_0, window_bounds = array<i64: 64, 128>}, {transform_indices = @transform_1, window_bounds = array<i64: 128, 16>}, {pipeline_mode = #tpu.pipeline_mode<synchronous>, transform_indices = @transform_2, window_bounds = array<i64: 16, 128>}, {pipeline_mode = #tpu.pipeline_mode<synchronous>, transform_indices = @transform_3, window_bounds = array<i64: 1, 128>}, {transform_indices = @transform_4, window_bounds = array<i64: 64, 128>}]} {
    %c0_i32 = arith.constant 0 : i32
    %0 = arith.cmpi eq, %arg1, %c0_i32 : i32
    %1 = arith.extui %0 : i1 to i32
    %c0_i32_0 = arith.constant 0 : i32
    %2 = arith.cmpi ne, %1, %c0_i32_0 : i32
    scf.if %2 {
      %cst_10 = arith.constant 0.000000e+00 : f32
      %12 = vector.broadcast %cst_10 : f32 to vector<64x16xf32>
      %c0_11 = arith.constant 0 : index
      %c0_12 = arith.constant 0 : index
      %13 = vector.load %arg7[%c0_11, %c0_12] : memref<64x16xf32, #tpu.memory_space<vmem>>, vector<64x16xf32>
      tpu.vector_store %arg7[%c0_11, %c0_12], %12 {strides = array<i32>} : memref<64x16xf32, #tpu.memory_space<vmem>>, vector<64x16xf32>,
    } else {
    }
    %c0 = arith.constant 0 : index
    %c0_1 = arith.constant 0 : index
    %3 = vector.load %arg2[%c0, %c0_1] : memref<64x128xbf16, #tpu.memory_space<vmem>>, vector<64x128xbf16>
    %c0_2 = arith.constant 0 : index
    %c0_3 = arith.constant 0 : index
    %4 = vector.load %arg3[%c0_2, %c0_3] : memref<128x16xbf16, #tpu.memory_space<vmem>>, vector<128x16xbf16>
    %c0_4 = arith.constant 0 : index
    %c0_5 = arith.constant 0 : index
    %5 = vector.load %arg7[%c0_4, %c0_5] : memref<64x16xf32, #tpu.memory_space<vmem>>, vector<64x16xf32>
    %cst = arith.constant dense<0.000000e+00> : vector<64x16xf32>
    %6 = tpu.matmul %3, %4, %cst {dimension_numbers = #tpu.dot_dimension_numbers<[1], [0], [0], [1], [0, 0, 1, 1], [], []>} : vector<64x128xbf16>, vector<128x16xbf16>, vector<64x16xf32> -> vector<64x16xf32>
    %7 = arith.addf %5, %6 : vector<64x16xf32>
    %c0_6 = arith.constant 0 : index
    %c0_7 = arith.constant 0 : index
    %8 = vector.load %arg7[%c0_6, %c0_7] : memref<64x16xf32, #tpu.memory_space<vmem>>, vector<64x16xf32>
    tpu.vector_store %arg7[%c0_6, %c0_7], %7 {strides = array<i32>} : memref<64x16xf32, #tpu.memory_space<vmem>>, vector<64x16xf32>,
    %c0_i32_8 = arith.constant 0 : i32
    %9 = arith.cmpi eq, %arg1, %c0_i32_8 : i32
    %10 = arith.extui %9 : i1 to i32
    %c0_i32_9 = arith.constant 0 : i32
    %11 = arith.cmpi ne, %10, %c0_i32_9 : i32
    scf.if %11 {
      %c0_10 = arith.constant 0 : index
      %c0_11 = arith.constant 0 : index
      %12 = vector.load %arg7[%c0_10, %c0_11] : memref<64x16xf32, #tpu.memory_space<vmem>>, vector<64x16xf32>
      %13 = arith.truncf %12 : vector<64x16xf32> to vector<64x16xbf16>
      %c0_12 = arith.constant 0 : index
      %c0_13 = arith.constant 0 : index
      %14 = vector.load %arg4[%c0_12, %c0_13] : memref<16x128xbf16, #tpu.memory_space<vmem>>, vector<16x128xbf16>
      %cst_14 = arith.constant dense<0.000000e+00> : vector<64x128xf32>
      %15 = tpu.matmul %13, %14, %cst_14 {dimension_numbers = #tpu.dot_dimension_numbers<[1], [0], [0], [1], [0, 0, 1, 1], [], []>} : vector<64x16xbf16>, vector<16x128xbf16>, vector<64x128xf32> -> vector<64x128xf32>
      %c0_15 = arith.constant 0 : index
      %c0_16 = arith.constant 0 : index
      %16 = vector.load %arg5[%c0_15, %c0_16] : memref<1x128xf32, #tpu.memory_space<vmem>>, vector<1x128xf32>
      %17 = vector.broadcast %16 : vector<1x128xf32> to vector<64x128xf32>
      %18 = arith.addf %15, %17 : vector<64x128xf32>
      %cst_17 = arith.constant 0.000000e+00 : f32
      %19 = vector.broadcast %cst_17 : f32 to vector<64x128xf32>
      %20 = arith.maximumf %18, %19 : vector<64x128xf32>
      %c0_18 = arith.constant 0 : index
      %c0_19 = arith.constant 0 : index
      %21 = vector.load %arg6[%c0_18, %c0_19] : memref<64x128xf32, #tpu.memory_space<vmem>>, vector<64x128xf32>
      tpu.vector_store %arg6[%c0_18, %c0_19], %20 {strides = array<i32>} : memref<64x128xf32, #tpu.memory_space<vmem>>, vector<64x128xf32>,
    } else {
    }
    return
  }
  func.func @transform_0(%arg0: i32, %arg1: i32) -> (i32, i32) {
    %c0_i32 = arith.constant 0 : i32
    return %arg0, %arg1 : i32, i32
  }
  func.func @transform_1(%arg0: i32, %arg1: i32) -> (i32, i32) {
    %c0_i32 = arith.constant 0 : i32
    %c0_i32_0 = arith.constant 0 : i32
    return %arg1, %c0_i32 : i32, i32
  }
  func.func @transform_2(%arg0: i32, %arg1: i32) -> (i32, i32) {
    %c0_i32 = arith.constant 0 : i32
    %c0_i32_0 = arith.constant 0 : i32
    %c0_i32_1 = arith.constant 0 : i32
    return %c0_i32, %c0_i32_0 : i32, i32
  }
  func.func @transform_3(%arg0: i32, %arg1: i32) -> (i32, i32) {
    %c0_i32 = arith.constant 0 : i32
    %c0_i32_0 = arith.constant 0 : i32
    %c0_i32_1 = arith.constant 0 : i32
    return %c0_i32, %c0_i32_0 : i32, i32
  }
  func.func @transform_4(%arg0: i32, %arg1: i32) -> (i32, i32) {
    %c0_i32 = arith.constant 0 : i32
    %c0_i32_0 = arith.constant 0 : i32
    return %arg0, %c0_i32 : i32, i32
  }
}

</mosaic_0001>

<llo_original>
// kernel: gcn_rel_forward.1
$region0: #{gcn_rel_forward.1}
  #allocation0 [shape = 'u32[]', space=smem, size = 0x4, offset = 0x4, fixed_abs, tag = 'smem constant byte address 0x4 - core index']
  #allocation1 [shape = 'u32[72,128]{1,0:T(1,128)}', space=vmem, size = 0x9000, scoped, tag = 'internal scratch']
  #allocation2 [shape = 'f32[64,16]{1,0:T(8,128)}', space=vmem, size = 0x8000, scoped, tag = 'scratch operand']
  %s0 = inlined_call_operand.vmem [shape: bf16[64,128], index: 0, kind: input, shape index: {}]
  %s1 = inlined_call_operand.vmem [shape: bf16[128,16], index: 1, kind: input, shape index: {}]
  %s2 = inlined_call_operand.vmem [shape: bf16[16,128], index: 2, kind: input, shape index: {}]
  %s3 = inlined_call_operand.vmem [shape: f32[1,128], index: 3, kind: input, shape index: {}]
  %s4 = inlined_call_operand.vmem [shape: f32[64,128], index: 4, kind: output, shape index: {}]
  %s5 = sld [smem:[#allocation0]]
  $region34: #{gcn_rel_forward.1} parent=0
    _
  %s7 = ssub.s32 1, %s5
  %s8 = scalar_select 0, %s7, %s5
  // Predicated region
  $region2: #{gcn_rel_forward.1} parent=0 // pred_check
    _
  $region3: #{gcn_rel_forward.1} parent=0 // pred_check_branch
    %10 = sbr.rel (0) target = $region5
  $region4: #{gcn_rel_forward.1} parent=0 // pred_region
    _
  $region5: #{gcn_rel_forward.1} parent=0 // pred_fallthru
    _
  // Predicated region
  $region6: #{gcn_rel_forward.1} parent=0 // pred_check
    _
  $region7: #{gcn_rel_forward.1} parent=0 // pred_check_branch
    %12 = sbr.rel (0) target = $region9
  $region8: #{gcn_rel_forward.1} parent=0 // pred_region
    _
  $region9: #{gcn_rel_forward.1} parent=0 // pred_fallthru
    _
  // Predicated region
  $region10: #{gcn_rel_forward.1} parent=0 // pred_check
    _
  $region11: #{gcn_rel_forward.1} parent=0 // pred_check_branch
    %14 = sbr.rel (0) target = $region13
  $region12: #{gcn_rel_forward.1} parent=0 // pred_region
    _
  $region13: #{gcn_rel_forward.1} parent=0 // pred_fallthru
    _
  // Predicated region
  $region14: #{gcn_rel_forward.1} parent=0 // pred_check
    _
  $region15: #{gcn_rel_forward.1} parent=0 // pred_check_branch
    %16 = sbr.rel (0) target = $region17
  $region16: #{gcn_rel_forward.1} parent=0 // pred_region
    _
  $region17: #{gcn_rel_forward.1} parent=0 // pred_fallthru
    _
  %p18 = scmp.eq.s32.totalorder 0, 0
  // Predicated region
  $region18: #{gcn_rel_forward.1} parent=0 // pred_check
    %p19 = pneg %p18
  $region19: #{gcn_rel_forward.1} parent=0 // pred_check_branch
    %21 = sbr.rel (%p19) target = $region21
  $region20: #{gcn_rel_forward.1} parent=0 // pred_region
    %vm22 = vcmask 130048
    %23 = vst.msk [vmem:[#allocation2] sm:$0xff] %vm22, 0.0
    %24 = vst.msk [vmem:[#allocation2 + $0x8] sm:$0xff] %vm22, 0.0
    %25 = vst.msk [vmem:[#allocation2 + $0x10] sm:$0xff] %vm22, 0.0
    %26 = vst.msk [vmem:[#allocation2 + $0x18] sm:$0xff] %vm22, 0.0
    %27 = vst.msk [vmem:[#allocation2 + $0x20] sm:$0xff] %vm22, 0.0
    %28 = vst.msk [vmem:[#allocation2 + $0x28] sm:$0xff] %vm22, 0.0
    %29 = vst.msk [vmem:[#allocation2 + $0x30] sm:$0xff] %vm22, 0.0
    %30 = vst.msk [vmem:[#allocation2 + $0x38] sm:$0xff] %vm22, 0.0
  $region21: #{gcn_rel_forward.1} parent=0 // pred_fallthru
    _
  %v31 = vld [vmem:[%s0] sm:$0xf]
  %v32 = vld [vmem:[%s0 + $0x4] sm:$0xf]
  %v33 = vld [vmem:[%s0 + $0x8] sm:$0xf]
  %v34 = vld [vmem:[%s0 + $0xc] sm:$0xf]
  %v35 = vld [vmem:[%s0 + $0x10] sm:$0xf]
  %v36 = vld [vmem:[%s0 + $0x14] sm:$0xf]
  %v37 = vld [vmem:[%s0 + $0x18] sm:$0xf]
  %v38 = vld [vmem:[%s0 + $0x1c] sm:$0xf]
  %v39 = vld [vmem:[%s1] sm:$0xf]
  %v40 = vld [vmem:[%s1 + $0x4] sm:$0xf]
  %v41 = vld [vmem:[%s1 + $0x8] sm:$0xf]
  %v42 = vld [vmem:[%s1 + $0xc] sm:$0xf]
  %v43 = vld [vmem:[%s1 + $0x10] sm:$0xf]
  %v44 = vld [vmem:[%s1 + $0x14] sm:$0xf]
  %v45 = vld [vmem:[%s1 + $0x18] sm:$0xf]
  %v46 = vld [vmem:[%s1 + $0x1c] sm:$0xf]
  %v47 = vld [vmem:[%s1 + $0x20] sm:$0xf]
  %v48 = vld [vmem:[%s1 + $0x24] sm:$0xf]
  %v49 = vld [vmem:[%s1 + $0x28] sm:$0xf]
  %v50 = vld [vmem:[%s1 + $0x2c] sm:$0xf]
  %v51 = vld [vmem:[%s1 + $0x30] sm:$0xf]
  %v52 = vld [vmem:[%s1 + $0x34] sm:$0xf]
  %v53 = vld [vmem:[%s1 + $0x38] sm:$0xf]
  %v54 = vld [vmem:[%s1 + $0x3c] sm:$0xf]
  %v55 = vld [vmem:[#allocation2] sm:$0xff]
  %v56 = vld [vmem:[#allocation2 + $0x8] sm:$0xff]
  %v57 = vld [vmem:[#allocation2 + $0x10] sm:$0xff]
  %v58 = vld [vmem:[#allocation2 + $0x18] sm:$0xff]
  %v59 = vld [vmem:[#allocation2 + $0x20] sm:$0xff]
  %v60 = vld [vmem:[#allocation2 + $0x28] sm:$0xff]
  %v61 = vld [vmem:[#allocation2 + $0x30] sm:$0xff]
  %v62 = vld [vmem:[#allocation2 + $0x38] sm:$0xff]
  %v71 = vunpack.c.l.b16 %v31
  %v72 = vunpack.c.l.b16 %v32
  %v73 = vunpack.c.l.b16 %v33
  %v74 = vunpack.c.l.b16 %v34
  %v75 = vunpack.c.l.b16 %v35
  %v76 = vunpack.c.l.b16 %v36
  %v77 = vunpack.c.l.b16 %v37
  %v78 = vunpack.c.l.b16 %v38
  %v79 = vpack.c.b16 %v72, %v71
  %v80 = vpack.c.b16 %v74, %v73
  %v81 = vpack.c.b16 %v76, %v75
  %v82 = vpack.c.b16 %v78, %v77
  %v103 = vunpack.c.l.b16 %v39
  %v104 = vunpack.c.l.b16 %v40
  %v105 = vunpack.c.l.b16 %v41
  %v106 = vunpack.c.l.b16 %v42
  %v107 = vunpack.c.l.b16 %v43
  %v108 = vunpack.c.l.b16 %v44
  %v109 = vunpack.c.l.b16 %v45
  %v110 = vunpack.c.l.b16 %v46
  %v111 = vunpack.c.l.b16 %v47
  %v112 = vunpack.c.l.b16 %v48
  %v113 = vunpack.c.l.b16 %v49
  %v114 = vunpack.c.l.b16 %v50
  %v115 = vunpack.c.l.b16 %v51
  %v116 = vunpack.c.l.b16 %v52
  %v117 = vunpack.c.l.b16 %v53
  %v118 = vunpack.c.l.b16 %v54
  %v119 = vpack.c.b16 %v104, %v103
  %v120 = vpack.c.b16 %v106, %v105
  %v121 = vpack.c.b16 %v108, %v107
  %v122 = vpack.c.b16 %v110, %v109
  %v123 = vpack.c.b16 %v112, %v111
  %v124 = vpack.c.b16 %v114, %v113
  %v125 = vpack.c.b16 %v116, %v115
  %v126 = vpack.c.b16 %v118, %v117
  %135 = vmatpush.bf16.msra.mxu0 %v126
  %136 = vmatpush.bf16.msra.mxu0 %v125
  %137 = vmatpush.bf16.msra.mxu0 %v124
  %138 = vmatpush.bf16.msra.mxu0 %v123
  %139 = vmatpush.bf16.msra.mxu0 %v122
  %140 = vmatpush.bf16.msra.mxu0 %v121
  %141 = vmatpush.bf16.msra.mxu0 %v120
  %142 = vmatpush.bf16.msra.mxu0 %v119
  %143 = vmatmul.bf16.gmra.mxu0 %v79
  %v144 = vpop.f32.mrf.mxu0
  %v145 = vadd.f32 0.0, %v144
  %v146 = vpop.f32.mrf.mxu0
  %v147 = vadd.f32 0.0, %v146
  %148 = vmatmul.bf16.gmra.mxu0 %v80
  %v149 = vpop.f32.mrf.mxu0
  %v150 = vadd.f32 0.0, %v149
  %v151 = vpop.f32.mrf.mxu0
  %v152 = vadd.f32 0.0, %v151
  %153 = vmatmul.bf16.gmra.mxu0 %v81
  %v154 = vpop.f32.mrf.mxu0
  %v155 = vadd.f32 0.0, %v154
  %v156 = vpop.f32.mrf.mxu0
  %v157 = vadd.f32 0.0, %v156
  %158 = vmatmul.bf16.gmra.mxu0 %v82
  %v159 = vpop.f32.mrf.mxu0
  %v160 = vadd.f32 0.0, %v159
  %v161 = vpop.f32.mrf.mxu0
  %v162 = vadd.f32 0.0, %v161
  %163 = vdwg.mxu0
  %v164 = vadd.f32 %v55, %v145
  %v165 = vadd.f32 %v56, %v147
  %v166 = vadd.f32 %v57, %v150
  %v167 = vadd.f32 %v58, %v152
  %v168 = vadd.f32 %v59, %v155
  %v169 = vadd.f32 %v60, %v157
  %v170 = vadd.f32 %v61, %v160
  %v171 = vadd.f32 %v62, %v162
  %vm172 = vcmask 130048
  %173 = vst.msk [vmem:[#allocation2] sm:$0xff] %vm172, %v164
  %174 = vst.msk [vmem:[#allocation2 + $0x8] sm:$0xff] %vm172, %v165
  %175 = vst.msk [vmem:[#allocation2 + $0x10] sm:$0xff] %vm172, %v166
  %176 = vst.msk [vmem:[#allocation2 + $0x18] sm:$0xff] %vm172, %v167
  %177 = vst.msk [vmem:[#allocation2 + $0x20] sm:$0xff] %vm172, %v168
  %178 = vst.msk [vmem:[#allocation2 + $0x28] sm:$0xff] %vm172, %v169
  %179 = vst.msk [vmem:[#allocation2 + $0x30] sm:$0xff] %vm172, %v170
  %180 = vst.msk [vmem:[#allocation2 + $0x38] sm:$0xff] %vm172, %v171
  // Predicated region
  $region22: #{gcn_rel_forward.1} parent=0 // pred_check
    %p181 = pneg %p18
  $region23: #{gcn_rel_forward.1} parent=0 // pred_check_branch
    %183 = sbr.rel (%p181) target = $region25
  $region24: #{gcn_rel_forward.1} parent=0 // pred_region
    %v184 = vld [vmem:[#allocation2] sm:$0xff]
    %v185 = vld [vmem:[#allocation2 + $0x8] sm:$0xff]
    %v186 = vld [vmem:[#allocation2 + $0x10] sm:$0xff]
    %v187 = vld [vmem:[#allocation2 + $0x18] sm:$0xff]
    %v188 = vld [vmem:[#allocation2 + $0x20] sm:$0xff]
    %v189 = vld [vmem:[#allocation2 + $0x28] sm:$0xff]
    %v190 = vld [vmem:[#allocation2 + $0x30] sm:$0xff]
    %v191 = vld [vmem:[#allocation2 + $0x38] sm:$0xff]
    %v192 = vpack.c.bf16 %v185, %v184
    %v193 = vpack.c.bf16 %v187, %v186
    %v194 = vpack.c.bf16 %v189, %v188
    %v195 = vpack.c.bf16 %v191, %v190
    %v196 = vld [vmem:[%s2] sm:$0xf]
    %v197 = vld [vmem:[%s2 + $0x4] sm:$0xf]
    %v198 = vld [vmem:[%s3] sm:$0x1]
    %v200 = vperm.slane %v198, 0
    %v204 = vunpack.c.l.b16 %v196
    %v205 = vunpack.c.l.b16 %v197
    %v206 = vpack.c.b16 %v205, %v204
    %v209 = vsel %vm172, %v192, 0
    %v212 = vsel %vm172, %v193, 0
    %v215 = vsel %vm172, %v194, 0
    %v218 = vsel %vm172, %v195, 0
    %220 = vmatpush.bf16.msra.mxu0 0
    %221 = vmatpush.bf16.msra.mxu0 0
    %222 = vmatpush.bf16.msra.mxu0 0
    %223 = vmatpush.bf16.msra.mxu0 0
    %224 = vmatpush.bf16.msra.mxu0 0
    %225 = vmatpush.bf16.msra.mxu0 0
    %226 = vmatpush.bf16.msra.mxu0 0
    %227 = vmatpush.bf16.msra.mxu0 %v206
    %228 = vmatmul.bf16.gmra.mxu0 %v209
    %v229 = vpop.f32.mrf.mxu0
    %v230 = vadd.f32 %v200, %v229
    %v231 = vpop.f32.mrf.mxu0
    %v232 = vadd.f32 %v200, %v231
    %233 = vmatmul.bf16.gmra.mxu0 %v212
    %v234 = vpop.f32.mrf.mxu0
    %v235 = vadd.f32 %v200, %v234
    %v236 = vpop.f32.mrf.mxu0
    %v237 = vadd.f32 %v200, %v236
    %238 = vmatmul.bf16.gmra.mxu0 %v215
    %v239 = vpop.f32.mrf.mxu0
    %v240 = vadd.f32 %v200, %v239
    %v241 = vpop.f32.mrf.mxu0
    %v242 = vadd.f32 %v200, %v241
    %243 = vmatmul.bf16.gmra.mxu0 %v218
    %v244 = vpop.f32.mrf.mxu0
    %v245 = vadd.f32 %v200, %v244
    %v246 = vpop.f32.mrf.mxu0
    %v247 = vadd.f32 %v200, %v246
    %248 = vdwg.mxu0
    %v249 = vmax.f32 %v230, 0.0
    %v250 = vmax.f32 %v232, 0.0
    %v251 = vmax.f32 %v235, 0.0
    %v252 = vmax.f32 %v237, 0.0
    %v253 = vmax.f32 %v240, 0.0
    %v254 = vmax.f32 %v242, 0.0
    %v255 = vmax.f32 %v245, 0.0
    %v256 = vmax.f32 %v247, 0.0
    %257 = vst [vmem:[%s4] sm:$0xff] %v249
    %258 = vst [vmem:[%s4 + $0x8] sm:$0xff] %v250
    %259 = vst [vmem:[%s4 + $0x10] sm:$0xff] %v251
    %260 = vst [vmem:[%s4 + $0x18] sm:$0xff] %v252
    %261 = vst [vmem:[%s4 + $0x20] sm:$0xff] %v253
    %262 = vst [vmem:[%s4 + $0x28] sm:$0xff] %v254
    %263 = vst [vmem:[%s4 + $0x30] sm:$0xff] %v255
    %264 = vst [vmem:[%s4 + $0x38] sm:$0xff] %v256
  $region25: #{gcn_rel_forward.1} parent=0 // pred_fallthru
    _
  // Predicated region
  $region26: #{gcn_rel_forward.1} parent=0 // pred_check
    _
  $region27: #{gcn_rel_forward.1} parent=0 // pred_check_branch
    %266 = sbr.rel (0) target = $region29
  $region28: #{gcn_rel_forward.1} parent=0 // pred_region
    _
  $region29: #{gcn_rel_forward.1} parent=0 // pred_fallthru
    _
  // Predicated region
  $region30: #{gcn_rel_forward.1} parent=0 // pred_check
    _
  $region31: #{gcn_rel_forward.1} parent=0 // pred_check_branch
    %268 = sbr.rel (0) target = $region33
  $region32: #{gcn_rel_forward.1} parent=0 // pred_region
    _
  $region33: #{gcn_rel_forward.1} parent=0 // pred_fallthru
    _

</llo_original>
